<compile_context>
chip_gen: v7x
topology: tpu7x:2x2x1
jax: 0.10.0
libtpu: 0.0.40
codegen_flags: <defaults>
</compile_context>

<pallas_src>
import functools

import jax
import jax.numpy as jnp
from jax import lax
from jax.experimental import pallas as pl
from jax.experimental.pallas import tpu as pltpu

EPS = 1e-12  # matches torch.nn.functional.normalize default eps


def _round_up(a, b):
    return (a + b - 1) // b * b


def _vmem_budget():
    """Explicit VMEM limit: ~3/4 of physical, capped at 96 MiB (v7x = 48 MiB)."""
    try:
        cap = int(getattr(pltpu.get_tpu_info(), "vmem_capacity_bytes", 64 << 20))
    except Exception:
        cap = 64 << 20
    return min(cap * 3 // 4, 96 << 20)


def _pick_tiles(M, V, H, budget):
    """(TM, TV) for the logits matmul, sized to double-buffered VMEM usage."""
    TV = min(512, _round_up(V, 128))
    TM = M if M <= 512 else 512

    def need(tm, tv):
        # 2x buffers: x tile (bf16) + w tile (bf16) + out tile (f32)
        return 2 * (tm * H * 2 + tv * H * 2 + tm * tv * 4)

    while need(TM, TV) > budget and TV > 128:
        TV -= 128
    while need(TM, TV) > budget and TM >= 32 and TM % 16 == 0:
        TM //= 2
    return TM, TV


# ----------------------------------------------------------------------------
# Prep kernel A: x -> L2-normalized * exp(log_scale), bf16.  One pass over M.
# ----------------------------------------------------------------------------
def _prep_x_kernel(x_ref, ls_ref, out_ref):
    x = x_ref[...].astype(jnp.float32)                               # (TM, H)
    scale = jnp.exp(ls_ref[0])
    inv = lax.rsqrt(jnp.maximum(jnp.sum(x * x, axis=-1, keepdims=True),
                                EPS * EPS))
    out_ref[...] = (x * (inv * scale)).astype(out_ref.dtype)


def prep_x(x_flat, log_scale, *, vmem_limit):
    M, H = x_flat.shape
    TM = M if M <= 512 else 512
    gm = pl.cdiv(M, TM)
    return pl.pallas_call(
        _prep_x_kernel,
        out_shape=jax.ShapeDtypeStruct((M, H), jnp.bfloat16),
        grid=(gm,),
        in_specs=[
            pl.BlockSpec((TM, H), lambda i: (i, 0)),
            pl.BlockSpec(memory_space=pltpu.MemorySpace.SMEM),
        ],
        out_specs=pl.BlockSpec((TM, H), lambda i: (i, 0)),
        compiler_params=pltpu.CompilerParams(
            dimension_semantics=("parallel",),
            vmem_limit_bytes=vmem_limit),
    )(x_flat, log_scale)


# ----------------------------------------------------------------------------
# Prep kernel B: weight_raw (V+1, H) -> L2-normalized, K-major (H, Vpad), bf16.
# Rows >= V (padding row, ragged over-read) are zero-masked so the matmul
# never consumes stale VMEM; extra columns feed only masked output writes.
# ----------------------------------------------------------------------------
def prep_weight(weight_raw, *, tv, vmem_limit):
    Vp1, H = weight_raw.shape
    V = Vp1 - 1
    gv = pl.cdiv(V, tv)
    Vpad = gv * tv

    def kernel(w_ref, out_ref):
        j = pl.program_id(0)
        w = w_ref[...].astype(jnp.float32)                           # (tv, H)
        inv = lax.rsqrt(jnp.maximum(jnp.sum(w * w, axis=-1, keepdims=True),
                                    EPS * EPS))
        wn = w * inv
        row = j * tv + lax.broadcasted_iota(jnp.int32, (tv, 1), 0)
        wn = jnp.where(row < V, wn, 0.0)                             # drop pad row
        out_ref[...] = wn.T.astype(out_ref.dtype)                    # (H, tv)

    return pl.pallas_call(
        kernel,
        out_shape=jax.ShapeDtypeStruct((H, Vpad), jnp.bfloat16),
        grid=(gv,),
        in_specs=[pl.BlockSpec((tv, H), lambda j: (j, 0))],
        out_specs=pl.BlockSpec((H, tv), lambda j: (0, j)),
        compiler_params=pltpu.CompilerParams(
            dimension_semantics=("parallel",),
            vmem_limit_bytes=vmem_limit),
    )(weight_raw)


# ----------------------------------------------------------------------------
# Kernel 1: float path -- pure NN matmul of pre-normalized bf16 operands.
#   xn tile (TM, H) bf16, wt tile (H, TV) bf16 -> out tile (TM, TV) f32.
# V innermost: xn block index constant across the inner axis (stays resident),
# only the weight streams from HBM.
# ----------------------------------------------------------------------------
def _cosine_logits_kernel(xn_ref, wt_ref, out_ref):
    out_ref[...] = jnp.dot(
        xn_ref[...], wt_ref[...], preferred_element_type=jnp.float32
    ).astype(out_ref.dtype)


def cosine_logits(x_flat, weight_raw, log_scale, *, out_dtype=jnp.float32):
    """x_flat: (M, H); weight_raw: (V+1, H); log_scale: (1,) -> (M, V) logits."""
    M, H = x_flat.shape
    Vp1, _ = weight_raw.shape
    V = Vp1 - 1

    budget = _vmem_budget()
    TM, TV = _pick_tiles(M, V, H, budget)

    xn = prep_x(x_flat, log_scale, vmem_limit=budget)            # (M, H) bf16
    wt = prep_weight(weight_raw, tv=TV, vmem_limit=budget)       # (H, Vpad) bf16

    gm, gv = pl.cdiv(M, TM), pl.cdiv(V, TV)
    Vpad = gv * TV

    cost = pl.CostEstimate(
        flops=2 * M * V * H,
        transcendentals=0,
        bytes_accessed=int(2 * M * H + 2 * Vpad * H * gm + 4 * M * V),
    )

    # TODO(synk): for extremely large H, add a third "arbitrary" H grid axis
    #             with an f32 accumulator scratch (norms are precomputed now).
    return pl.pallas_call(
        _cosine_logits_kernel,
        out_shape=jax.ShapeDtypeStruct((M, V), out_dtype),
        grid=(gm, gv),                                  # V innermost: W streams
        in_specs=[
            pl.BlockSpec((TM, H), lambda i, j: (i, 0)),
            pl.BlockSpec((H, TV), lambda i, j: (0, j)),
        ],
        out_specs=pl.BlockSpec((TM, TV), lambda i, j: (i, j)),
        compiler_params=pltpu.CompilerParams(
            dimension_semantics=("parallel", "parallel"),
            vmem_limit_bytes=budget),
        cost_estimate=cost,
    )(xn, wt)


# ----------------------------------------------------------------------------
# Kernel 2: int path -- batched embedding gather of L2-normalized rows.
# R tokens per grid step in two halves: issue all row DMAs for the step up
# front, then wait+normalize half 0 while half 1's DMAs complete.  Each grid
# step is self-contained, so the token axis is "parallel" (2 TCs on v7x).
# ----------------------------------------------------------------------------
def _embed_kernel(ids_ref, w_hbm, out_ref, buf, sems):
    RH = buf.shape[1]                 # rows per half
    R = 2 * RH
    g = pl.program_id(0)
    base = g * R

    def fetch(half):
        for r in range(RH):
            row = ids_ref[base + half * RH + r]
            pltpu.make_async_copy(
                w_hbm.at[row], buf.at[half, r], sems.at[half, r]
            ).start()

    fetch(0)
    fetch(1)

    def finish(half):
        for r in range(RH):
            pltpu.make_async_copy(
                w_hbm.at[0], buf.at[half, r], sems.at[half, r]
            ).wait()
        rows = buf[half].astype(jnp.float32)                         # (RH, H)
        inv = lax.rsqrt(jnp.maximum(jnp.sum(rows * rows, axis=-1, keepdims=True),
                                    EPS * EPS))
        out_ref[pl.ds(half * RH, RH), :] = (rows * inv).astype(out_ref.dtype)

    finish(0)
    finish(1)


def _embed_call(ids, weight_raw, R):
    N = ids.shape[0]
    Vp1, H = weight_raw.shape
    Np = _round_up(N, R)
    ids_p = ids if Np == N else jnp.pad(ids, (0, Np - N))
    RH = R // 2

    grid_spec = pltpu.PrefetchScalarGridSpec(
        num_scalar_prefetch=1,
        grid=(Np // R,),
        in_specs=[pl.BlockSpec(memory_space=pl.ANY)],          # weight stays in HBM
        out_specs=pl.BlockSpec((R, H), lambda g, ids: (g, 0)),
        scratch_shapes=[
            pltpu.VMEM((2, RH, H), weight_raw.dtype),          # intra-step double buffer
            pltpu.SemaphoreType.DMA((2, RH)),
        ],
    )
    out = pl.pallas_call(
        _embed_kernel,
        grid_spec=grid_spec,
        out_shape=jax.ShapeDtypeStruct((Np, H), weight_raw.dtype),
        compiler_params=pltpu.CompilerParams(dimension_semantics=("parallel",)),
    )(ids_p, weight_raw)
    return out if Np == N else out[:N]


def embed(ids_flat, weight_raw, *, rows_per_step=32, max_ids_per_call=4096):
    """ids_flat: (N,) int32; weight_raw: (V+1, H) -> (N, H) normalized rows."""
    N = ids_flat.shape[0]
    if N <= max_ids_per_call:
        return _embed_call(ids_flat, weight_raw, rows_per_step)
    # Chunk so the scalar-prefetched ids never overflow SMEM (1-D arrays pad
    # to next_pow2(4N) bytes).
    outs = []
    for s in range(0, N, max_ids_per_call):
        outs.append(_embed_call(ids_flat[s:s + max_ids_per_call], weight_raw,
                                rows_per_step))
    return jnp.concatenate(outs, axis=0)


# ----------------------------------------------------------------------------
# Module wrapper
# ----------------------------------------------------------------------------
class WeightSharedVocabulary:
    def __init__(self, vocab_size, hidden_size, key, learnable_padding_token=False):
        self.vocab_size = vocab_size
        self.hidden_size = hidden_size
        self.weight_raw = jax.random.normal(
            key, (vocab_size + 1, hidden_size), dtype=jnp.float32)
        self.log_scale = jnp.zeros((1,), dtype=jnp.float32)
        # padding_idx only influences gradients in PyTorch's F.embedding; the
        # forward pass is an ordinary gather either way.
        self.padding_idx = None if learnable_padding_token else vocab_size

    def __call__(self, x):
        if jnp.issubdtype(x.dtype, jnp.floating):
            lead = x.shape[:-1]
            x_flat = x.reshape((-1, self.hidden_size))
            out = cosine_logits(x_flat, self.weight_raw, self.log_scale)
            return out.reshape(lead + (self.vocab_size,))
        else:
            lead = x.shape
            ids_flat = x.reshape((-1,)).astype(jnp.int32)
            out = embed(ids_flat, self.weight_raw)
            return out.reshape(lead + (self.hidden_size,))


# ----------------------------------------------------------------------------
# Pure-JAX reference (for correctness check)
# ----------------------------------------------------------------------------
def _l2n(v):
    return v / jnp.maximum(jnp.linalg.norm(v, axis=-1, keepdims=True), EPS)


def ref_float(x, weight_raw, log_scale):
    w = _l2n(weight_raw)
    return _l2n(x) @ w[:-1, :].T * jnp.exp(log_scale[0])


def ref_int(ids, weight_raw):
    return _l2n(weight_raw)[ids]


if __name__ == "__main__":
    key = jax.random.PRNGKey(0)
    k_w, k_x, k_i, k_w2, k_x2 = jax.random.split(key, 5)

    # ---- primary test: V a multiple of 128 ---------------------------------
    vocab_size, hidden_size = 1024, 128
    batch, seq = 2, 8
    module = WeightSharedVocabulary(vocab_size, hidden_size, k_w)

    # Float path: (batch, seq, hidden) -> (batch, seq, vocab)
    x_float = jax.random.normal(k_x, (batch, seq, hidden_size), dtype=jnp.float32)
    logits = jax.block_until_ready(module(x_float))
    logits_ref = ref_float(
        x_float.reshape(-1, hidden_size), module.weight_raw, module.log_scale
    ).reshape(batch, seq, vocab_size)
    assert logits.shape == (batch, seq, vocab_size)
    # bf16 MXU operands -> tolerance loosened vs the f32 reference.
    assert jnp.allclose(logits, logits_ref, atol=2e-2, rtol=2e-2)

    # Int path: (batch, seq) token ids (include the padding index vocab_size)
    token_ids = jax.random.randint(k_i, (batch, seq), 0, vocab_size + 1,
                                   dtype=jnp.int32)
    emb = jax.block_until_ready(module(token_ids))
    emb_ref = ref_int(token_ids, module.weight_raw)
    assert emb.shape == (batch, seq, hidden_size)
    assert jnp.allclose(emb, emb_ref, atol=1e-5, rtol=1e-5)

    # ---- ragged test: V not a multiple of 128 / of the 512-wide tile -------
    vocab2 = 600
    module2 = WeightSharedVocabulary(vocab2, hidden_size, k_w2)
    x2 = jax.random.normal(k_x2, (1, 8, hidden_size), dtype=jnp.float32)
    logits2 = jax.block_until_ready(module2(x2))
    logits2_ref = ref_float(
        x2.reshape(-1, hidden_size), module2.weight_raw, module2.log_scale
    ).reshape(1, 8, vocab2)
    assert logits2.shape == (1, 8, vocab2)
    assert jnp.allclose(logits2, logits2_ref, atol=2e-2, rtol=2e-2)

    print("KERNEL_OK")
</pallas_src>

<mosaic_0001>
module attributes {stable_mosaic.version = 11 : i64} {
  func.func @_prep_x_kernel(%arg0: i32, %arg1: memref<16x128xf32, #tpu.memory_space<vmem>>, %arg2: memref<1xf32, #tpu.memory_space<smem>>, %arg3: memref<16x128xbf16, #tpu.memory_space<vmem>>) attributes {dimension_semantics = [#tpu.dimension_semantics<parallel>], iteration_bounds = array<i64: 1>, scalar_prefetch = 0 : i64, scratch_operands = 0 : i64, tpu.core_type = #tpu.core_type<tc>, window_params = [{transform_indices = @transform_0, window_bounds = array<i64: 16, 128>}, {transform_indices = @transform_1, window_bounds = array<i64: 1>}, {transform_indices = @transform_2, window_bounds = array<i64: 16, 128>}]} {
    %c0 = arith.constant 0 : index
    %c0_0 = arith.constant 0 : index
    %0 = vector.load %arg1[%c0, %c0_0] : memref<16x128xf32, #tpu.memory_space<vmem>>, vector<16x128xf32>
    %c0_1 = arith.constant 0 : index
    %1 = memref.load %arg2[%c0_1] : memref<1xf32, #tpu.memory_space<smem>>
    %2 = math.exp %1 : f32
    %3 = arith.mulf %0, %0 : vector<16x128xf32>
    %cst = arith.constant dense<0.000000e+00> : vector<16xf32>
    %4 = vector.multi_reduction <add>, %3, %cst [1] : vector<16x128xf32> to vector<16xf32>
    %5 = vector.shape_cast %4 : vector<16xf32> to vector<16x1xf32>
    %cst_2 = arith.constant 1.000000e-24 : f32
    %6 = vector.broadcast %cst_2 : f32 to vector<16x1xf32>
    %7 = arith.maximumf %5, %6 : vector<16x1xf32>
    %8 = math.rsqrt %7 : vector<16x1xf32>
    %9 = vector.broadcast %2 : f32 to vector<16x1xf32>
    %10 = arith.mulf %8, %9 : vector<16x1xf32>
    %11 = vector.broadcast %10 : vector<16x1xf32> to vector<16x128xf32>
    %12 = arith.mulf %0, %11 : vector<16x128xf32>
    %13 = arith.truncf %12 : vector<16x128xf32> to vector<16x128xbf16>
    %c0_3 = arith.constant 0 : index
    %c0_4 = arith.constant 0 : index
    %14 = vector.load %arg3[%c0_3, %c0_4] : memref<16x128xbf16, #tpu.memory_space<vmem>>, vector<16x128xbf16>
    tpu.vector_store %arg3[%c0_3, %c0_4], %13 {strides = array<i32>} : memref<16x128xbf16, #tpu.memory_space<vmem>>, vector<16x128xbf16>,
    return
  }
  func.func @transform_0(%arg0: i32) -> (i32, i32) {
    %c0_i32 = arith.constant 0 : i32
    %c0_i32_0 = arith.constant 0 : i32
    return %arg0, %c0_i32 : i32, i32
  }
  func.func @transform_1(%arg0: i32) -> i32 {
    %c0_i32 = arith.constant 0 : i32
    %c0_i32_0 = arith.constant 0 : i32
    return %c0_i32 : i32
  }
  func.func @transform_2(%arg0: i32) -> (i32, i32) {
    %c0_i32 = arith.constant 0 : i32
    %c0_i32_0 = arith.constant 0 : i32
    return %arg0, %c0_i32 : i32, i32
  }
}

</mosaic_0001>

<llo_original>
// kernel: tpu_custom_call.1
$region0: #{tpu_custom_call.1}
  #allocation0 [shape = 'u32[]', space=smem, size = 0x4, offset = 0x4, fixed_abs, tag = 'smem constant byte address 0x4 - core index']
  #allocation1 [shape = 'u32[144,128]{1,0:T(1,128)}', space=vmem, size = 0x12000, scoped, tag = 'internal scratch']
  #allocation2 [shape = 'f32[1]{0:T(128)S(6)}', space=smem, size = 0x200, scoped, tag = 'scoped memory for tpu_custom_call.1']
  %s0 = inlined_call_operand.hbm [shape: f32[16,128], index: 0, kind: input, shape index: {}]
  %s1 = inlined_call_operand.<no memory space> [shape: f32[1], index: 1, kind: input, shape index: {}]
  %s2 = inlined_call_operand.hbm [shape: bf16[16,128], index: 2, kind: output, shape index: {}]
  %s3 = sld [smem:[#allocation0]]
  $region22: #{tpu_custom_call.1} parent=0
    _
  %s5 = ssub.s32 1, %s3
  %s6 = scalar_select 0, %s5, %s3
  %7 = sst [smem:[#allocation2]] %s1
  $region1: #{tpu_custom_call.1} parent=0
    #allocation3 [shape = 'u8[8192]{0}', space=vmem, size = 0x2000, scoped, tag = 'input window, operand 0, single buffered']
    #allocation4 [shape = 's32[1]{0}', space=sflag, size = 0x4, scoped, tag = 'scoped memory for tpu_custom_call.1']
    #allocation5 [shape = 's32[1]{0}', space=sflag, size = 0x4, scoped, tag = 'scoped memory for tpu_custom_call.1']
    #allocation6 [shape = 'u8[4096]{0}', space=vmem, size = 0x1000, scoped, tag = 'output window, operand 0, single buffered']
    %8 = vsyncpa [#allocation4], 0
    %9 = vsyncpa [#allocation5], 0
    // Predicated region
    $region2: #{tpu_custom_call.1} parent=1 // pred_check
      _
    $region3: #{tpu_custom_call.1} parent=1 // pred_check_branch
      %11 = sbr.rel (0) target = $region5
    $region4: #{tpu_custom_call.1} parent=1 // pred_region
      %s13 = ssub.s32 256, 256
      %14 = vsyncadd [#allocation4], %s13
      %s15 = sshll.u32 [#allocation3], 4
      %s16 = int_to_ptr.vmem [resolvable:$true] %s15
      %21 = dma.hbm_to_vmem [thread:$0]  %s0, 256, %s16, [#allocation4], 128, 128, 8
    $region5: #{tpu_custom_call.1} parent=1 // pred_fallthru
      _
    // Predicated region
    $region6: #{tpu_custom_call.1} parent=1 // pred_check
      _
    $region7: #{tpu_custom_call.1} parent=1 // pred_check_branch
      %23 = sbr.rel (0) target = $region9
    $region8: #{tpu_custom_call.1} parent=1 // pred_region
      _
    $region9: #{tpu_custom_call.1} parent=1 // pred_fallthru
      _
    // Predicated region
    $region10: #{tpu_custom_call.1} parent=1 // pred_check
      _
    $region11: #{tpu_custom_call.1} parent=1 // pred_check_branch
      %25 = sbr.rel (0) target = $region13
    $region12: #{tpu_custom_call.1} parent=1 // pred_region
      %26 = dma.done [#allocation4], 256
    $region13: #{tpu_custom_call.1} parent=1 // pred_fallthru
      _
    %v27 = vld [vmem:[#allocation3] sm:$0xff]
    %v28 = vld [vmem:[#allocation3 + $0x8] sm:$0xff]
    %s29 = sld [smem:[#allocation2]]
    %v30 = vstv %s29
    %v31 = vmul.f32 %v30, 1.442695
    %v32 = vpow.pop %v31
    %s33 = vtos %v32
    %v34 = vmul.f32 %v27, %v27
    %v35 = vmul.f32 %v28, %v28
    %36 = vadd.xlane.f32.xlu0 %v34
    %v37 = vpop.xlane.xlu0 %36
    %38 = vadd.xlane.f32.xlu0 %v35
    %v39 = vpop.xlane.xlu0 %38
    %v40 = vmax.f32 %v37, 1e-24
    %v41 = vmax.f32 %v39, 1e-24
    %v42 = vrsqrt.pop %v40
    %v43 = vrsqrt.pop %v41
    %v44 = vstv %s33
    %v45 = vmul.f32 %v42, %v44
    %v46 = vmul.f32 %v43, %v44
    %v47 = vmul.f32 %v27, %v45
    %v48 = vmul.f32 %v28, %v46
    %v49 = vpack.c.bf16 %v48, %v47
    %v51 = vunpack.c.l.b16 %v49
    %v52 = vunpack.c.h.b16 %v49
    %v53 = vpack.c.b16 %v51, %v51
    %v54 = vpack.c.b16 %v52, %v52
    %57 = vst [vmem:[#allocation6] sm:$0xf] %v53
    %58 = vst [vmem:[#allocation6 + $0x4] sm:$0xf] %v54
    // Predicated region
    $region14: #{tpu_custom_call.1} parent=1 // pred_check
      _
    $region15: #{tpu_custom_call.1} parent=1 // pred_check_branch
      %60 = sbr.rel (0) target = $region17
    $region16: #{tpu_custom_call.1} parent=1 // pred_region
      %s62 = ssub.s32 128, 128
      %63 = vsyncadd [#allocation5], %s62
      %s64 = sshll.u32 [#allocation6], 4
      %s65 = int_to_ptr.vmem [resolvable:$true] %s64
      %70 = dma.vmem_to_hbm [thread:$0]  %s65, 128, %s2, [#allocation5], 64, 64, 4
    $region17: #{tpu_custom_call.1} parent=1 // pred_fallthru
      _
    // Predicated region
    $region18: #{tpu_custom_call.1} parent=1 // pred_check
      _
    $region19: #{tpu_custom_call.1} parent=1 // pred_check_branch
      %72 = sbr.rel (0) target = $region21
    $region20: #{tpu_custom_call.1} parent=1 // pred_region
      %73 = dma.done [#allocation5], 128
    $region21: #{tpu_custom_call.1} parent=1 // pred_fallthru
      _
    %74 = vsyncpa [#allocation4], 1
    %75 = vsyncpa [#allocation5], 1

</llo_original>
